<compile_context>
chip_gen: v7x
topology: tpu7x:2x2x1
jax: 0.10.0
libtpu: 0.0.40
codegen_flags: <defaults>
</compile_context>

<pallas_src>
import jax
import jax.numpy as jnp
import numpy as np
from jax.experimental import pallas as pl
from jax.experimental.pallas import tpu as pltpu

HIDDEN = 128          # BATCH_SIZE in the reference script == hidden width
N_OBS = 4             # CartPole-v1 observation dim
N_ACTIONS = 2         # CartPole-v1 action dim
LANE = 128            # TPU lane width
SUBLANE_MULT = 16     # batch-tile multiple; safe for both f32 (8) and bf16 (16) tiling


def _round_up(x, m):
    return ((x + m - 1) // m) * m


def _tpu_kind():
    try:
        return jax.devices()[0].device_kind.lower()
    except Exception:
        return ""


def _tensorcores_per_chip(kind):
    # v7x (and v4/v5p megacore) expose 2 TensorCores per chip; v5e/v6e have 1.
    return 2 if any(tag in kind for tag in ("v7", "v4", "v5p")) else 1


def _auto_tile_b(kind):
    # The kernel is overhead-bound (~0.35us fixed cost per grid step), so bigger
    # batch tiles are better. v5e (1 vst slot, ~820 GB/s HBM) prefers moderate
    # tiles; v6e/v7x go big.
    if "v5 lite" in kind or "v5e" in kind:
        return 512
    return 1024


def dqn_kernel(x_ref, w1_ref, b1_ref, w2_ref, b2_ref, w3_ref, b3_ref, o_ref):
    """Fused 3-layer MLP: relu(x@W1+b1) -> relu(.@W2+b2) -> .@W3+b3 (padded cols)."""
    x = x_ref[...]                       # (tile_b, n_obs)  f32
    w1 = w1_ref[...]                     # (n_obs, hidden)  f32
    tile_b, n_obs = x.shape
    hidden = w1.shape[1]

    # --- Layer 1 on the VPU: K = n_obs is tiny, so n_obs broadcast FMAs are
    # cheaper than a mostly-zero-padded systolic pass. Stays f32 (v5e VPU has
    # no bf16). Bias broadcast hoisted once, outside the unrolled loop.
    h1 = jnp.broadcast_to(b1_ref[...], (tile_b, hidden))
    for k in range(n_obs):               # static unroll (n_obs == 4)
        h1 = h1 + x[:, k:k + 1] * w1[k:k + 1, :]
    h1 = jnp.maximum(h1, 0.0)

    # --- Layer 2 on the MXU: bf16 operands (W2 pre-cast in prepare_params),
    # f32 accumulation.
    h2 = jnp.dot(h1.astype(jnp.bfloat16), w2_ref[...],
                 preferred_element_type=jnp.float32) + b2_ref[...]
    h2 = jnp.maximum(h2, 0.0)

    # --- Layer 3 on the MXU in f32: only n_actions real output columns (padded
    # to a full 128-lane tile for an unmasked, lane-dense store), so the extra
    # f32 MXU passes cost nothing and the Q-values stay near-f32 accurate.
    out = jnp.dot(h2, w3_ref[...], preferred_element_type=jnp.float32) + b3_ref[...]
    o_ref[...] = out.astype(o_ref.dtype)  # bf16 store halves padded writeback


def prepare_params(params):
    """One-time parameter preprocessing for the kernel (hoisted out of the
    per-call path): pads the final layer to a lane-dense 128-column tile and
    pre-casts the layer-2 weights to bf16. Call once, reuse every forward."""
    w3, b3 = params["w3"], params["b3"]
    n_act = w3.shape[1]
    n_out = max(LANE, _round_up(n_act, LANE))
    return {
        "w1": params["w1"],
        "b1": params["b1"],
        "w2_bf16": params["w2"].astype(jnp.bfloat16),
        "b2": params["b2"],
        # Layer 3 stays f32 (tighter Q-value accuracy at negligible cost).
        "w3_pad": jnp.pad(w3, ((0, 0), (0, n_out - n_act))),
        "b3_pad": jnp.pad(b3, ((0, 0), (0, n_out - n_act))),
        "n_actions": n_act,
    }


def dqn_forward(x, params, *, tile_b=None, out_dtype=jnp.bfloat16):
    """x: [B, n_obs] float32. params: output of prepare_params (raw params are
    accepted too, but then the pad/cast preprocessing re-runs every call)."""
    if "w2_bf16" not in params:
        params = prepare_params(params)

    B, n_obs = x.shape
    w1, b1 = params["w1"], params["b1"]
    w2, b2 = params["w2_bf16"], params["b2"]
    w3, b3 = params["w3_pad"], params["b3_pad"]
    hidden = w1.shape[1]
    n_out = w3.shape[1]
    n_act = int(params["n_actions"])

    kind = _tpu_kind()
    if tile_b is None:
        tile_b = _auto_tile_b(kind)

    # Batch tile: as large as possible (amortizes per-grid-step overhead and
    # MXU weight-load/drain), but never larger than the rounded batch.
    tile = min(_round_up(max(tile_b, SUBLANE_MULT), SUBLANE_MULT),
               _round_up(B, SUBLANE_MULT))
    # 2-TensorCore chips (v7x): make sure the batch axis has >= 2 grid steps so
    # the "parallel" dimension actually shards work across both cores.
    if _tensorcores_per_chip(kind) >= 2 and B >= 2 * SUBLANE_MULT:
        tile = min(tile, _round_up(pl.cdiv(B, 2), SUBLANE_MULT))

    B_pad = _round_up(B, tile)
    if B_pad != B:
        x = jnp.pad(x, ((0, B_pad - B), (0, 0)))
    grid = (B_pad // tile,)

    def weight_spec(shape, single_buffer):
        # Constant index_map -> never re-fetched across grid steps; a second
        # pipeline buffer would be pure VMEM/DMA waste.
        if single_buffer:
            return pl.BlockSpec(shape, lambda i: (0, 0),
                                pipeline_mode=pl.Buffered(1))
        return pl.BlockSpec(shape, lambda i: (0, 0))

    def build_call(single_buffer_weights):
        return pl.pallas_call(
            dqn_kernel,
            out_shape=jax.ShapeDtypeStruct((B_pad, n_out), out_dtype),
            grid_spec=pltpu.PrefetchScalarGridSpec(
                num_scalar_prefetch=0,
                grid=grid,
                in_specs=[
                    # batch tile of the input
                    pl.BlockSpec((tile, n_obs), lambda i: (i, 0)),
                    # weights / biases: full arrays, VMEM-resident across the grid
                    weight_spec((n_obs, hidden), single_buffer_weights),
                    weight_spec((1, hidden), single_buffer_weights),
                    weight_spec((hidden, hidden), single_buffer_weights),
                    weight_spec((1, hidden), single_buffer_weights),
                    weight_spec((hidden, n_out), single_buffer_weights),
                    weight_spec((1, n_out), single_buffer_weights),
                ],
                out_specs=pl.BlockSpec((tile, n_out), lambda i: (i, 0)),
            ),
            compiler_params=pltpu.CompilerParams(
                # batch axis shards across the 2 TensorCores on v7x
                dimension_semantics=("parallel",),
            ),
        )

    args = (x, w1, b1, w2, b2, w3, b3)
    try:
        out = build_call(True)(*args)
    except Exception:
        # Fallback: some JAX versions reject buffer_count=1; default buffering.
        out = build_call(False)(*args)

    return out[:B, :n_act]


def init_params(key, n_obs=N_OBS, hidden=HIDDEN, n_actions=N_ACTIONS):
    """Deterministic init matching torch.nn.Linear's U(-1/sqrt(fan_in), 1/sqrt(fan_in))."""
    ks = jax.random.split(key, 6)

    def lin(kw, kb, fan_in, fan_out):
        bound = 1.0 / np.sqrt(fan_in)
        w = jax.random.uniform(kw, (fan_in, fan_out), jnp.float32, -bound, bound)
        b = jax.random.uniform(kb, (1, fan_out), jnp.float32, -bound, bound)
        return w, b

    w1, b1 = lin(ks[0], ks[1], n_obs, hidden)
    w2, b2 = lin(ks[2], ks[3], hidden, hidden)
    w3, b3 = lin(ks[4], ks[5], hidden, n_actions)
    return {"w1": w1, "b1": b1, "w2": w2, "b2": b2, "w3": w3, "b3": b3}


def reference_forward(x, p):
    h1 = jnp.maximum(x @ p["w1"] + p["b1"], 0.0)
    h2 = jnp.maximum(h1 @ p["w2"] + p["b2"], 0.0)
    return h2 @ p["w3"] + p["b3"]


if __name__ == "__main__":
    key = jax.random.PRNGKey(0)
    k_params, k_x, k_x2 = jax.random.split(key, 3)

    raw_params = init_params(k_params)
    params = prepare_params(raw_params)   # one-time pad/cast, reused every forward

    # Small example batch of CartPole states.
    B = 8
    x = jax.random.normal(k_x, (B, N_OBS), jnp.float32)
    out = jax.block_until_ready(dqn_forward(x, params))
    ref = reference_forward(x, raw_params)
    # Layer-2 bf16 operands + bf16 output store => loosened tolerance vs f32 ref.
    np.testing.assert_allclose(np.asarray(out).astype(np.float32),
                               np.asarray(ref), rtol=2e-2, atol=2e-2)
    assert out.shape == (B, N_ACTIONS)

    # Exercise the multi-step ("parallel") grid + batch padding + output slicing.
    B2 = 300
    x2 = jax.random.normal(k_x2, (B2, N_OBS), jnp.float32)
    out2 = jax.block_until_ready(dqn_forward(x2, params, tile_b=128))
    ref2 = reference_forward(x2, raw_params)
    np.testing.assert_allclose(np.asarray(out2).astype(np.float32),
                               np.asarray(ref2), rtol=2e-2, atol=2e-2)
    assert out2.shape == (B2, N_ACTIONS)

    print("KERNEL_OK")
</pallas_src>

<mosaic_0001>
module attributes {stable_mosaic.version = 11 : i64} {
  func.func @dqn_kernel(%arg0: i32, %arg1: memref<16x4xf32, #tpu.memory_space<vmem>>, %arg2: memref<4x128xf32, #tpu.memory_space<vmem>>, %arg3: memref<1x128xf32, #tpu.memory_space<vmem>>, %arg4: memref<128x128xbf16, #tpu.memory_space<vmem>>, %arg5: memref<1x128xf32, #tpu.memory_space<vmem>>, %arg6: memref<128x128xf32, #tpu.memory_space<vmem>>, %arg7: memref<1x128xf32, #tpu.memory_space<vmem>>, %arg8: memref<16x128xbf16, #tpu.memory_space<vmem>>) attributes {dimension_semantics = [#tpu.dimension_semantics<parallel>], iteration_bounds = array<i64: 1>, scalar_prefetch = 0 : i64, scratch_operands = 0 : i64, tpu.core_type = #tpu.core_type<tc>, window_params = [{transform_indices = @transform_0, window_bounds = array<i64: 16, 4>}, {pipeline_mode = #tpu.pipeline_mode<synchronous>, transform_indices = @transform_1, window_bounds = array<i64: 4, 128>}, {pipeline_mode = #tpu.pipeline_mode<synchronous>, transform_indices = @transform_2, window_bounds = array<i64: 1, 128>}, {pipeline_mode = #tpu.pipeline_mode<synchronous>, transform_indices = @transform_3, window_bounds = array<i64: 128, 128>}, {pipeline_mode = #tpu.pipeline_mode<synchronous>, transform_indices = @transform_4, window_bounds = array<i64: 1, 128>}, {pipeline_mode = #tpu.pipeline_mode<synchronous>, transform_indices = @transform_5, window_bounds = array<i64: 128, 128>}, {pipeline_mode = #tpu.pipeline_mode<synchronous>, transform_indices = @transform_6, window_bounds = array<i64: 1, 128>}, {transform_indices = @transform_7, window_bounds = array<i64: 16, 128>}]} {
    %c0 = arith.constant 0 : index
    %c0_0 = arith.constant 0 : index
    %0 = vector.load %arg1[%c0, %c0_0] : memref<16x4xf32, #tpu.memory_space<vmem>>, vector<16x4xf32>
    %c0_1 = arith.constant 0 : index
    %c0_2 = arith.constant 0 : index
    %1 = vector.load %arg2[%c0_1, %c0_2] : memref<4x128xf32, #tpu.memory_space<vmem>>, vector<4x128xf32>
    %c0_3 = arith.constant 0 : index
    %c0_4 = arith.constant 0 : index
    %2 = vector.load %arg3[%c0_3, %c0_4] : memref<1x128xf32, #tpu.memory_space<vmem>>, vector<1x128xf32>
    %3 = vector.shape_cast %2 : vector<1x128xf32> to vector<1x128xf32>
    %4 = vector.broadcast %3 : vector<1x128xf32> to vector<16x128xf32>
    %5 = vector.extract_strided_slice %0 {offsets = [0, 0], sizes = [16, 1], strides = [1, 1]} : vector<16x4xf32> to vector<16x1xf32>
    %6 = vector.extract_strided_slice %1 {offsets = [0, 0], sizes = [1, 128], strides = [1, 1]} : vector<4x128xf32> to vector<1x128xf32>
    %7 = vector.broadcast %5 : vector<16x1xf32> to vector<16x128xf32>
    %8 = vector.broadcast %6 : vector<1x128xf32> to vector<16x128xf32>
    %9 = arith.mulf %7, %8 : vector<16x128xf32>
    %10 = arith.addf %4, %9 : vector<16x128xf32>
    %11 = vector.extract_strided_slice %0 {offsets = [0, 1], sizes = [16, 1], strides = [1, 1]} : vector<16x4xf32> to vector<16x1xf32>
    %12 = vector.extract_strided_slice %1 {offsets = [1, 0], sizes = [1, 128], strides = [1, 1]} : vector<4x128xf32> to vector<1x128xf32>
    %13 = vector.broadcast %11 : vector<16x1xf32> to vector<16x128xf32>
    %14 = vector.broadcast %12 : vector<1x128xf32> to vector<16x128xf32>
    %15 = arith.mulf %13, %14 : vector<16x128xf32>
    %16 = arith.addf %10, %15 : vector<16x128xf32>
    %17 = vector.extract_strided_slice %0 {offsets = [0, 2], sizes = [16, 1], strides = [1, 1]} : vector<16x4xf32> to vector<16x1xf32>
    %18 = vector.extract_strided_slice %1 {offsets = [2, 0], sizes = [1, 128], strides = [1, 1]} : vector<4x128xf32> to vector<1x128xf32>
    %19 = vector.broadcast %17 : vector<16x1xf32> to vector<16x128xf32>
    %20 = vector.broadcast %18 : vector<1x128xf32> to vector<16x128xf32>
    %21 = arith.mulf %19, %20 : vector<16x128xf32>
    %22 = arith.addf %16, %21 : vector<16x128xf32>
    %23 = vector.extract_strided_slice %0 {offsets = [0, 3], sizes = [16, 1], strides = [1, 1]} : vector<16x4xf32> to vector<16x1xf32>
    %24 = vector.extract_strided_slice %1 {offsets = [3, 0], sizes = [1, 128], strides = [1, 1]} : vector<4x128xf32> to vector<1x128xf32>
    %25 = vector.broadcast %23 : vector<16x1xf32> to vector<16x128xf32>
    %26 = vector.broadcast %24 : vector<1x128xf32> to vector<16x128xf32>
    %27 = arith.mulf %25, %26 : vector<16x128xf32>
    %28 = arith.addf %22, %27 : vector<16x128xf32>
    %cst = arith.constant 0.000000e+00 : f32
    %29 = vector.broadcast %cst : f32 to vector<16x128xf32>
    %30 = arith.maximumf %28, %29 : vector<16x128xf32>
    %31 = arith.truncf %30 : vector<16x128xf32> to vector<16x128xbf16>
    %c0_5 = arith.constant 0 : index
    %c0_6 = arith.constant 0 : index
    %32 = vector.load %arg4[%c0_5, %c0_6] : memref<128x128xbf16, #tpu.memory_space<vmem>>, vector<128x128xbf16>
    %cst_7 = arith.constant dense<0.000000e+00> : vector<16x128xf32>
    %33 = tpu.matmul %31, %32, %cst_7 {dimension_numbers = #tpu.dot_dimension_numbers<[1], [0], [0], [1], [0, 0, 1, 1], [], []>} : vector<16x128xbf16>, vector<128x128xbf16>, vector<16x128xf32> -> vector<16x128xf32>
    %c0_8 = arith.constant 0 : index
    %c0_9 = arith.constant 0 : index
    %34 = vector.load %arg5[%c0_8, %c0_9] : memref<1x128xf32, #tpu.memory_space<vmem>>, vector<1x128xf32>
    %35 = vector.broadcast %34 : vector<1x128xf32> to vector<16x128xf32>
    %36 = arith.addf %33, %35 : vector<16x128xf32>
    %cst_10 = arith.constant 0.000000e+00 : f32
    %37 = vector.broadcast %cst_10 : f32 to vector<16x128xf32>
    %38 = arith.maximumf %36, %37 : vector<16x128xf32>
    %c0_11 = arith.constant 0 : index
    %c0_12 = arith.constant 0 : index
    %39 = vector.load %arg6[%c0_11, %c0_12] : memref<128x128xf32, #tpu.memory_space<vmem>>, vector<128x128xf32>
    %cst_13 = arith.constant dense<0.000000e+00> : vector<16x128xf32>
    %40 = tpu.matmul %38, %39, %cst_13 {dimension_numbers = #tpu.dot_dimension_numbers<[1], [0], [0], [1], [0, 0, 1, 1], [], []>} : vector<16x128xf32>, vector<128x128xf32>, vector<16x128xf32> -> vector<16x128xf32>
    %c0_14 = arith.constant 0 : index
    %c0_15 = arith.constant 0 : index
    %41 = vector.load %arg7[%c0_14, %c0_15] : memref<1x128xf32, #tpu.memory_space<vmem>>, vector<1x128xf32>
    %42 = vector.broadcast %41 : vector<1x128xf32> to vector<16x128xf32>
    %43 = arith.addf %40, %42 : vector<16x128xf32>
    %44 = arith.truncf %43 : vector<16x128xf32> to vector<16x128xbf16>
    %c0_16 = arith.constant 0 : index
    %c0_17 = arith.constant 0 : index
    %45 = vector.load %arg8[%c0_16, %c0_17] : memref<16x128xbf16, #tpu.memory_space<vmem>>, vector<16x128xbf16>
    tpu.vector_store %arg8[%c0_16, %c0_17], %44 {strides = array<i32>} : memref<16x128xbf16, #tpu.memory_space<vmem>>, vector<16x128xbf16>,
    return
  }
  func.func @transform_0(%arg0: i32) -> (i32, i32) {
    %c0_i32 = arith.constant 0 : i32
    %c0_i32_0 = arith.constant 0 : i32
    return %arg0, %c0_i32 : i32, i32
  }
  func.func @transform_1(%arg0: i32) -> (i32, i32) {
    %c0_i32 = arith.constant 0 : i32
    %c0_i32_0 = arith.constant 0 : i32
    %c0_i32_1 = arith.constant 0 : i32
    return %c0_i32, %c0_i32_0 : i32, i32
  }
  func.func @transform_2(%arg0: i32) -> (i32, i32) {
    %c0_i32 = arith.constant 0 : i32
    %c0_i32_0 = arith.constant 0 : i32
    %c0_i32_1 = arith.constant 0 : i32
    return %c0_i32, %c0_i32_0 : i32, i32
  }
  func.func @transform_3(%arg0: i32) -> (i32, i32) {
    %c0_i32 = arith.constant 0 : i32
    %c0_i32_0 = arith.constant 0 : i32
    %c0_i32_1 = arith.constant 0 : i32
    return %c0_i32, %c0_i32_0 : i32, i32
  }
  func.func @transform_4(%arg0: i32) -> (i32, i32) {
    %c0_i32 = arith.constant 0 : i32
    %c0_i32_0 = arith.constant 0 : i32
    %c0_i32_1 = arith.constant 0 : i32
    return %c0_i32, %c0_i32_0 : i32, i32
  }
  func.func @transform_5(%arg0: i32) -> (i32, i32) {
    %c0_i32 = arith.constant 0 : i32
    %c0_i32_0 = arith.constant 0 : i32
    %c0_i32_1 = arith.constant 0 : i32
    return %c0_i32, %c0_i32_0 : i32, i32
  }
  func.func @transform_6(%arg0: i32) -> (i32, i32) {
    %c0_i32 = arith.constant 0 : i32
    %c0_i32_0 = arith.constant 0 : i32
    %c0_i32_1 = arith.constant 0 : i32
    return %c0_i32, %c0_i32_0 : i32, i32
  }
  func.func @transform_7(%arg0: i32) -> (i32, i32) {
    %c0_i32 = arith.constant 0 : i32
    %c0_i32_0 = arith.constant 0 : i32
    return %arg0, %c0_i32 : i32, i32
  }
}

module attributes {stable_mosaic.version = 11 : i64} {
  func.func @dqn_kernel(%arg0: i32, %arg1: memref<16x4xf32, #tpu.memory_space<vmem>>, %arg2: memref<4x128xf32, #tpu.memory_space<vmem>>, %arg3: memref<1x128xf32, #tpu.memory_space<vmem>>, %arg4: memref<128x128xbf16, #tpu.memory_space<vmem>>, %arg5: memref<1x128xf32, #tpu.memory_space<vmem>>, %arg6: memref<128x128xf32, #tpu.memory_space<vmem>>, %arg7: memref<1x128xf32, #tpu.memory_space<vmem>>, %arg8: memref<16x128xbf16, #tpu.memory_space<vmem>>) attributes {dimension_semantics = [#tpu.dimension_semantics<parallel>], iteration_bounds = array<i64: 1>, scalar_prefetch = 0 : i64, scratch_operands = 0 : i64, tpu.core_type = #tpu.core_type<tc>, window_params = [{transform_indices = @transform_0, window_bounds = array<i64: 16, 4>}, {pipeline_mode = #tpu.pipeline_mode<synchronous>, transform_indices = @transform_1, window_bounds = array<i64: 4, 128>}, {pipeline_mode = #tpu.pipeline_mode<synchronous>, transform_indices = @transform_2, window_bounds = array<i64: 1, 128>}, {pipeline_mode = #tpu.pipeline_mode<synchronous>, transform_indices = @transform_3, window_bounds = array<i64: 128, 128>}, {pipeline_mode = #tpu.pipeline_mode<synchronous>, transform_indices = @transform_4, window_bounds = array<i64: 1, 128>}, {pipeline_mode = #tpu.pipeline_mode<synchronous>, transform_indices = @transform_5, window_bounds = array<i64: 128, 128>}, {pipeline_mode = #tpu.pipeline_mode<synchronous>, transform_indices = @transform_6, window_bounds = array<i64: 1, 128>}, {transform_indices = @transform_7, window_bounds = array<i64: 16, 128>}]} {
    %c0 = arith.constant 0 : index
    %c0_0 = arith.constant 0 : index
    %0 = vector.load %arg1[%c0, %c0_0] : memref<16x4xf32, #tpu.memory_space<vmem>>, vector<16x4xf32>
    %c0_1 = arith.constant 0 : index
    %c0_2 = arith.constant 0 : index
    %1 = vector.load %arg2[%c0_1, %c0_2] : memref<4x128xf32, #tpu.memory_space<vmem>>, vector<4x128xf32>
    %c0_3 = arith.constant 0 : index
    %c0_4 = arith.constant 0 : index
    %2 = vector.load %arg3[%c0_3, %c0_4] : memref<1x128xf32, #tpu.memory_space<vmem>>, vector<1x128xf32>
    %3 = vector.shape_cast %2 : vector<1x128xf32> to vector<1x128xf32>
    %4 = vector.broadcast %3 : vector<1x128xf32> to vector<16x128xf32>
    %5 = vector.extract_strided_slice %0 {offsets = [0, 0], sizes = [16, 1], strides = [1, 1]} : vector<16x4xf32> to vector<16x1xf32>
    %6 = vector.extract_strided_slice %1 {offsets = [0, 0], sizes = [1, 128], strides = [1, 1]} : vector<4x128xf32> to vector<1x128xf32>
    %7 = vector.broadcast %5 : vector<16x1xf32> to vector<16x128xf32>
    %8 = vector.broadcast %6 : vector<1x128xf32> to vector<16x128xf32>
    %9 = arith.mulf %7, %8 : vector<16x128xf32>
    %10 = arith.addf %4, %9 : vector<16x128xf32>
    %11 = vector.extract_strided_slice %0 {offsets = [0, 1], sizes = [16, 1], strides = [1, 1]} : vector<16x4xf32> to vector<16x1xf32>
    %12 = vector.extract_strided_slice %1 {offsets = [1, 0], sizes = [1, 128], strides = [1, 1]} : vector<4x128xf32> to vector<1x128xf32>
    %13 = vector.broadcast %11 : vector<16x1xf32> to vector<16x128xf32>
    %14 = vector.broadcast %12 : vector<1x128xf32> to vector<16x128xf32>
    %15 = arith.mulf %13, %14 : vector<16x128xf32>
    %16 = arith.addf %10, %15 : vector<16x128xf32>
    %17 = vector.extract_strided_slice %0 {offsets = [0, 2], sizes = [16, 1], strides = [1, 1]} : vector<16x4xf32> to vector<16x1xf32>
    %18 = vector.extract_strided_slice %1 {offsets = [2, 0], sizes = [1, 128], strides = [1, 1]} : vector<4x128xf32> to vector<1x128xf32>
    %19 = vector.broadcast %17 : vector<16x1xf32> to vector<16x128xf32>
    %20 = vector.broadcast %18 : vector<1x128xf32> to vector<16x128xf32>
    %21 = arith.mulf %19, %20 : vector<16x128xf32>
    %22 = arith.addf %16, %21 : vector<16x128xf32>
    %23 = vector.extract_strided_slice %0 {offsets = [0, 3], sizes = [16, 1], strides = [1, 1]} : vector<16x4xf32> to vector<16x1xf32>
    %24 = vector.extract_strided_slice %1 {offsets = [3, 0], sizes = [1, 128], strides = [1, 1]} : vector<4x128xf32> to vector<1x128xf32>
    %25 = vector.broadcast %23 : vector<16x1xf32> to vector<16x128xf32>
    %26 = vector.broadcast %24 : vector<1x128xf32> to vector<16x128xf32>
    %27 = arith.mulf %25, %26 : vector<16x128xf32>
    %28 = arith.addf %22, %27 : vector<16x128xf32>
    %cst = arith.constant 0.000000e+00 : f32
    %29 = vector.broadcast %cst : f32 to vector<16x128xf32>
    %30 = arith.maximumf %28, %29 : vector<16x128xf32>
    %31 = arith.truncf %30 : vector<16x128xf32> to vector<16x128xbf16>
    %c0_5 = arith.constant 0 : index
    %c0_6 = arith.constant 0 : index
    %32 = vector.load %arg4[%c0_5, %c0_6] : memref<128x128xbf16, #tpu.memory_space<vmem>>, vector<128x128xbf16>
    %cst_7 = arith.constant dense<0.000000e+00> : vector<16x128xf32>
    %33 = tpu.matmul %31, %32, %cst_7 {dimension_numbers = #tpu.dot_dimension_numbers<[1], [0], [0], [1], [0, 0, 1, 1], [], []>} : vector<16x128xbf16>, vector<128x128xbf16>, vector<16x128xf32> -> vector<16x128xf32>
    %c0_8 = arith.constant 0 : index
    %c0_9 = arith.constant 0 : index
    %34 = vector.load %arg5[%c0_8, %c0_9] : memref<1x128xf32, #tpu.memory_space<vmem>>, vector<1x128xf32>
    %35 = vector.broadcast %34 : vector<1x128xf32> to vector<16x128xf32>
    %36 = arith.addf %33, %35 : vector<16x128xf32>
    %cst_10 = arith.constant 0.000000e+00 : f32
    %37 = vector.broadcast %cst_10 : f32 to vector<16x128xf32>
    %38 = arith.maximumf %36, %37 : vector<16x128xf32>
    %c0_11 = arith.constant 0 : index
    %c0_12 = arith.constant 0 : index
    %39 = vector.load %arg6[%c0_11, %c0_12] : memref<128x128xf32, #tpu.memory_space<vmem>>, vector<128x128xf32>
    %cst_13 = arith.constant dense<0.000000e+00> : vector<16x128xf32>
    %40 = tpu.matmul %38, %39, %cst_13 {dimension_numbers = #tpu.dot_dimension_numbers<[1], [0], [0], [1], [0, 0, 1, 1], [], []>} : vector<16x128xf32>, vector<128x128xf32>, vector<16x128xf32> -> vector<16x128xf32>
    %c0_14 = arith.constant 0 : index
    %c0_15 = arith.constant 0 : index
    %41 = vector.load %arg7[%c0_14, %c0_15] : memref<1x128xf32, #tpu.memory_space<vmem>>, vector<1x128xf32>
    %42 = vector.broadcast %41 : vector<1x128xf32> to vector<16x128xf32>
    %43 = arith.addf %40, %42 : vector<16x128xf32>
    %44 = arith.truncf %43 : vector<16x128xf32> to vector<16x128xbf16>
    %c0_16 = arith.constant 0 : index
    %c0_17 = arith.constant 0 : index
    %45 = vector.load %arg8[%c0_16, %c0_17] : memref<16x128xbf16, #tpu.memory_space<vmem>>, vector<16x128xbf16>
    tpu.vector_store %arg8[%c0_16, %c0_17], %44 {strides = array<i32>} : memref<16x128xbf16, #tpu.memory_space<vmem>>, vector<16x128xbf16>,
    return
  }
  func.func @transform_0(%arg0: i32) -> (i32, i32) {
    %c0_i32 = arith.constant 0 : i32
    %c0_i32_0 = arith.constant 0 : i32
    return %arg0, %c0_i32 : i32, i32
  }
  func.func @transform_1(%arg0: i32) -> (i32, i32) {
    %c0_i32 = arith.constant 0 : i32
    %c0_i32_0 = arith.constant 0 : i32
    %c0_i32_1 = arith.constant 0 : i32
    return %c0_i32, %c0_i32_0 : i32, i32
  }
  func.func @transform_2(%arg0: i32) -> (i32, i32) {
    %c0_i32 = arith.constant 0 : i32
    %c0_i32_0 = arith.constant 0 : i32
    %c0_i32_1 = arith.constant 0 : i32
    return %c0_i32, %c0_i32_0 : i32, i32
  }
  func.func @transform_3(%arg0: i32) -> (i32, i32) {
    %c0_i32 = arith.constant 0 : i32
    %c0_i32_0 = arith.constant 0 : i32
    %c0_i32_1 = arith.constant 0 : i32
    return %c0_i32, %c0_i32_0 : i32, i32
  }
  func.func @transform_4(%arg0: i32) -> (i32, i32) {
    %c0_i32 = arith.constant 0 : i32
    %c0_i32_0 = arith.constant 0 : i32
    %c0_i32_1 = arith.constant 0 : i32
    return %c0_i32, %c0_i32_0 : i32, i32
  }
  func.func @transform_5(%arg0: i32) -> (i32, i32) {
    %c0_i32 = arith.constant 0 : i32
    %c0_i32_0 = arith.constant 0 : i32
    %c0_i32_1 = arith.constant 0 : i32
    return %c0_i32, %c0_i32_0 : i32, i32
  }
  func.func @transform_6(%arg0: i32) -> (i32, i32) {
    %c0_i32 = arith.constant 0 : i32
    %c0_i32_0 = arith.constant 0 : i32
    %c0_i32_1 = arith.constant 0 : i32
    return %c0_i32, %c0_i32_0 : i32, i32
  }
  func.func @transform_7(%arg0: i32) -> (i32, i32) {
    %c0_i32 = arith.constant 0 : i32
    %c0_i32_0 = arith.constant 0 : i32
    return %arg0, %c0_i32 : i32, i32
  }
}

</mosaic_0001>

<llo_original>
// kernel: tpu_custom_call.1
$region0: #{tpu_custom_call.1}
  #allocation0 [shape = 'u32[]', space=smem, size = 0x4, offset = 0x4, fixed_abs, tag = 'smem constant byte address 0x4 - core index']
  #allocation1 [shape = 'u32[144,128]{1,0:T(1,128)}', space=vmem, size = 0x12000, scoped, tag = 'internal scratch']
  %s0 = inlined_call_operand.vmem [shape: f32[16,4], index: 0, kind: input, shape index: {}]
  %s1 = inlined_call_operand.vmem [shape: f32[4,128], index: 1, kind: input, shape index: {}]
  %s2 = inlined_call_operand.vmem [shape: f32[1,128], index: 2, kind: input, shape index: {}]
  %s3 = inlined_call_operand.hbm [shape: bf16[128,128], index: 3, kind: input, shape index: {}]
  %s4 = inlined_call_operand.vmem [shape: f32[1,128], index: 4, kind: input, shape index: {}]
  %s5 = inlined_call_operand.hbm [shape: f32[128,128], index: 5, kind: input, shape index: {}]
  %s6 = inlined_call_operand.vmem [shape: f32[1,128], index: 6, kind: input, shape index: {}]
  %s7 = inlined_call_operand.hbm [shape: bf16[16,128], index: 7, kind: output, shape index: {}]
  %s8 = sld [smem:[#allocation0]]
  $region46: #{tpu_custom_call.1} parent=0
    _
  %s10 = ssub.s32 1, %s8
  %s11 = scalar_select 0, %s10, %s8
  $region1: #{tpu_custom_call.1} parent=0
    #allocation2 [shape = 'u8[32768]{0}', space=vmem, size = 0x8000, scoped, tag = 'input window, operand 3, single buffered']
    #allocation3 [shape = 's32[1]{0}', space=sflag, size = 0x4, scoped, tag = 'scoped memory for tpu_custom_call.1']
    #allocation4 [shape = 's32[1]{0}', space=sflag, size = 0x4, scoped, tag = 'scoped memory for tpu_custom_call.1']
    #allocation5 [shape = 'u8[65536]{0}', space=vmem, size = 0x10000, scoped, tag = 'input window, operand 5, single buffered']
    #allocation6 [shape = 's32[1]{0}', space=sflag, size = 0x4, scoped, tag = 'scoped memory for tpu_custom_call.1']
    #allocation7 [shape = 'u8[4096]{0}', space=vmem, size = 0x1000, scoped, tag = 'output window, operand 0, single buffered']
    %12 = vsyncpa [#allocation3], 0
    %13 = vsyncpa [#allocation6], 0
    %14 = vsyncpa [#allocation4], 0
    // Predicated region
    $region2: #{tpu_custom_call.1} parent=1 // pred_check
      _
    $region3: #{tpu_custom_call.1} parent=1 // pred_check_branch
      %16 = sbr.rel (0) target = $region5
    $region4: #{tpu_custom_call.1} parent=1 // pred_region
      _
    $region5: #{tpu_custom_call.1} parent=1 // pred_fallthru
      _
    // Predicated region
    $region6: #{tpu_custom_call.1} parent=1 // pred_check
      _
    $region7: #{tpu_custom_call.1} parent=1 // pred_check_branch
      %18 = sbr.rel (0) target = $region9
    $region8: #{tpu_custom_call.1} parent=1 // pred_region
      _
    $region9: #{tpu_custom_call.1} parent=1 // pred_fallthru
      _
    // Predicated region
    $region10: #{tpu_custom_call.1} parent=1 // pred_check
      _
    $region11: #{tpu_custom_call.1} parent=1 // pred_check_branch
      %20 = sbr.rel (0) target = $region13
    $region12: #{tpu_custom_call.1} parent=1 // pred_region
      _
    $region13: #{tpu_custom_call.1} parent=1 // pred_fallthru
      _
    // Predicated region
    $region14: #{tpu_custom_call.1} parent=1 // pred_check
      _
    $region15: #{tpu_custom_call.1} parent=1 // pred_check_branch
      %22 = sbr.rel (0) target = $region17
    $region16: #{tpu_custom_call.1} parent=1 // pred_region
      %s24 = ssub.s32 1024, 1024
      %25 = vsyncadd [#allocation3], %s24
      %s26 = sshll.u32 [#allocation2], 4
      %s27 = int_to_ptr.vmem [resolvable:$true] %s26
      %32 = dma.hbm_to_vmem [thread:$0]  %s3, 1024, %s27, [#allocation3], 64, 64, 4
    $region17: #{tpu_custom_call.1} parent=1 // pred_fallthru
      _
    // Predicated region
    $region18: #{tpu_custom_call.1} parent=1 // pred_check
      _
    $region19: #{tpu_custom_call.1} parent=1 // pred_check_branch
      %34 = sbr.rel (0) target = $region21
    $region20: #{tpu_custom_call.1} parent=1 // pred_region
      _
    $region21: #{tpu_custom_call.1} parent=1 // pred_fallthru
      _
    // Predicated region
    $region22: #{tpu_custom_call.1} parent=1 // pred_check
      _
    $region23: #{tpu_custom_call.1} parent=1 // pred_check_branch
      %36 = sbr.rel (0) target = $region25
    $region24: #{tpu_custom_call.1} parent=1 // pred_region
      %s38 = ssub.s32 2048, 2048
      %39 = vsyncadd [#allocation6], %s38
      %s40 = sshll.u32 [#allocation5], 4
      %s41 = int_to_ptr.vmem [resolvable:$true] %s40
      %46 = dma.hbm_to_vmem [thread:$0]  %s5, 2048, %s41, [#allocation6], 128, 128, 8
    $region25: #{tpu_custom_call.1} parent=1 // pred_fallthru
      _
    // Predicated region
    $region26: #{tpu_custom_call.1} parent=1 // pred_check
      _
    $region27: #{tpu_custom_call.1} parent=1 // pred_check_branch
      %48 = sbr.rel (0) target = $region29
    $region28: #{tpu_custom_call.1} parent=1 // pred_region
      _
    $region29: #{tpu_custom_call.1} parent=1 // pred_fallthru
      _
    // Predicated region
    $region30: #{tpu_custom_call.1} parent=1 // pred_check
      _
    $region31: #{tpu_custom_call.1} parent=1 // pred_check_branch
      %50 = sbr.rel (0) target = $region33
    $region32: #{tpu_custom_call.1} parent=1 // pred_region
      %51 = dma.done [#allocation3], 1024
    $region33: #{tpu_custom_call.1} parent=1 // pred_fallthru
      _
    // Predicated region
    $region34: #{tpu_custom_call.1} parent=1 // pred_check
      _
    $region35: #{tpu_custom_call.1} parent=1 // pred_check_branch
      %53 = sbr.rel (0) target = $region37
    $region36: #{tpu_custom_call.1} parent=1 // pred_region
      %54 = dma.done [#allocation6], 2048
    $region37: #{tpu_custom_call.1} parent=1 // pred_fallthru
      _
    %v56 = vld [vmem:[%s0] sm:$0xff]
    %v57 = vld [vmem:[%s0 + $0x8] sm:$0xff]
    %v58 = vld [vmem:[%s1] sm:$0xf]
    %v59 = vld [vmem:[%s2] sm:$0x1]
    %v61 = vlaneseq
    %v62 = vshrl.u32 %v61, 7
    %v63 = vsub.s32 0, %v62
    %v64 = vrot.slane %v59, %v63
    %67 = vset.pattern.permute.xlu0 0
    %68 = vperm.xlu0 %67, %v56
    %v69 = vpop.permute.xlu0 %68
    %72 = vset.pattern.permute.xlu0 0
    %73 = vperm.xlu0 %72, %v57
    %v74 = vpop.permute.xlu0 %73
    %v76 = vlaneseq
    %v77 = vshrl.u32 %v76, 7
    %v78 = vsub.s32 0, %v77
    %v79 = vrot.slane %v58, %v78
    %v80 = vmul.f32 %v69, %v79
    %v81 = vmul.f32 %v74, %v79
    %v82 = vadd.f32 %v64, %v80
    %v83 = vadd.f32 %v64, %v81
    %84 = vset.pattern.permute.xlu0 1
    %85 = vperm.xlu0 %84, %v56
    %v86 = vpop.permute.xlu0 %85
    %88 = vset.pattern.permute.xlu0 1
    %89 = vperm.xlu0 %88, %v57
    %v90 = vpop.permute.xlu0 %89
    %v92 = vlaneseq
    %v93 = vshrl.u32 %v92, 7
    %v94 = vsub.s32 1, %v93
    %v95 = vrot.slane %v58, %v94
    %v96 = vmul.f32 %v86, %v95
    %v97 = vmul.f32 %v90, %v95
    %v98 = vadd.f32 %v82, %v96
    %v99 = vadd.f32 %v83, %v97
    %100 = vset.pattern.permute.xlu0 2
    %101 = vperm.xlu0 %100, %v56
    %v102 = vpop.permute.xlu0 %101
    %104 = vset.pattern.permute.xlu0 2
    %105 = vperm.xlu0 %104, %v57
    %v106 = vpop.permute.xlu0 %105
    %v108 = vlaneseq
    %v109 = vshrl.u32 %v108, 7
    %v110 = vsub.s32 2, %v109
    %v111 = vrot.slane %v58, %v110
    %v112 = vmul.f32 %v102, %v111
    %v113 = vmul.f32 %v106, %v111
    %v114 = vadd.f32 %v98, %v112
    %v115 = vadd.f32 %v99, %v113
    %116 = vset.pattern.permute.xlu0 3
    %117 = vperm.xlu0 %116, %v56
    %v118 = vpop.permute.xlu0 %117
    %120 = vset.pattern.permute.xlu0 3
    %121 = vperm.xlu0 %120, %v57
    %v122 = vpop.permute.xlu0 %121
    %v124 = vlaneseq
    %v125 = vshrl.u32 %v124, 7
    %v126 = vsub.s32 3, %v125
    %v127 = vrot.slane %v58, %v126
    %v128 = vmul.f32 %v118, %v127
    %v129 = vmul.f32 %v122, %v127
    %v130 = vadd.f32 %v114, %v128
    %v131 = vadd.f32 %v115, %v129
    %v132 = vmax.f32 %v130, 0.0
    %v133 = vmax.f32 %v131, 0.0
    %v134 = vpack.c.bf16 %v133, %v132
    %v135 = vld [vmem:[#allocation2] sm:$0xf]
    %v136 = vld [vmem:[#allocation2 + $0x4] sm:$0xf]
    %v137 = vld [vmem:[#allocation2 + $0x8] sm:$0xf]
    %v138 = vld [vmem:[#allocation2 + $0xc] sm:$0xf]
    %v139 = vld [vmem:[#allocation2 + $0x10] sm:$0xf]
    %v140 = vld [vmem:[#allocation2 + $0x14] sm:$0xf]
    %v141 = vld [vmem:[#allocation2 + $0x18] sm:$0xf]
    %v142 = vld [vmem:[#allocation2 + $0x1c] sm:$0xf]
    %v143 = vld [vmem:[#allocation2 + $0x20] sm:$0xf]
    %v144 = vld [vmem:[#allocation2 + $0x24] sm:$0xf]
    %v145 = vld [vmem:[#allocation2 + $0x28] sm:$0xf]
    %v146 = vld [vmem:[#allocation2 + $0x2c] sm:$0xf]
    %v147 = vld [vmem:[#allocation2 + $0x30] sm:$0xf]
    %v148 = vld [vmem:[#allocation2 + $0x34] sm:$0xf]
    %v149 = vld [vmem:[#allocation2 + $0x38] sm:$0xf]
    %v150 = vld [vmem:[#allocation2 + $0x3c] sm:$0xf]
    %v151 = vld [vmem:[%s4] sm:$0x1]
    %v153 = vlaneseq
    %v154 = vshrl.u32 %v153, 7
    %v155 = vsub.s32 0, %v154
    %v156 = vrot.slane %v151, %v155
    %v174 = vunpack.c.l.b16 %v135
    %v175 = vunpack.c.l.b16 %v136
    %v176 = vunpack.c.l.b16 %v137
    %v177 = vunpack.c.l.b16 %v138
    %v178 = vunpack.c.l.b16 %v139
    %v179 = vunpack.c.l.b16 %v140
    %v180 = vunpack.c.l.b16 %v141
    %v181 = vunpack.c.l.b16 %v142
    %v182 = vunpack.c.l.b16 %v143
    %v183 = vunpack.c.l.b16 %v144
    %v184 = vunpack.c.l.b16 %v145
    %v185 = vunpack.c.l.b16 %v146
    %v186 = vunpack.c.l.b16 %v147
    %v187 = vunpack.c.l.b16 %v148
    %v188 = vunpack.c.l.b16 %v149
    %v189 = vunpack.c.l.b16 %v150
    %v190 = vpack.c.b16 %v175, %v174
    %v191 = vpack.c.b16 %v177, %v176
    %v192 = vpack.c.b16 %v179, %v178
    %v193 = vpack.c.b16 %v181, %v180
    %v194 = vpack.c.b16 %v183, %v182
    %v195 = vpack.c.b16 %v185, %v184
    %v196 = vpack.c.b16 %v187, %v186
    %v197 = vpack.c.b16 %v189, %v188
    %206 = vmatprep.subr.bf16.mxu0 0
    %207 = vmatpush1.bf16.msra.mxu0 %v190
    %208 = vmatprep.subr.bf16.mxu0 0
    %209 = vmatpush1.bf16.msra.mxu0 %v191
    %210 = vmatprep.subr.bf16.mxu0 0
    %211 = vmatpush1.bf16.msra.mxu0 %v192
    %212 = vmatprep.subr.bf16.mxu0 0
    %213 = vmatpush1.bf16.msra.mxu0 %v193
    %214 = vmatprep.subr.bf16.mxu0 0
    %215 = vmatpush1.bf16.msra.mxu0 %v194
    %216 = vmatprep.subr.bf16.mxu0 0
    %217 = vmatpush1.bf16.msra.mxu0 %v195
    %218 = vmatprep.subr.bf16.mxu0 0
    %219 = vmatpush1.bf16.msra.mxu0 %v196
    %220 = vmatprep.subr.bf16.mxu0 0
    %221 = vmatpush1.bf16.msra.mxu0 %v197
    %222 = vmatprep.subr.bf16.mxu0 0
    %223 = vmatpush1.bf16.msra.mxu0 0
    %224 = vmatprep.subr.bf16.mxu0 0
    %225 = vmatpush1.bf16.msra.mxu0 0
    %226 = vmatprep.subr.bf16.mxu0 0
    %227 = vmatpush1.bf16.msra.mxu0 0
    %228 = vmatprep.subr.bf16.mxu0 0
    %229 = vmatpush1.bf16.msra.mxu0 0
    %230 = vmatprep.subr.bf16.mxu0 0
    %231 = vmatpush1.bf16.msra.mxu0 0
    %232 = vmatprep.subr.bf16.mxu0 0
    %233 = vmatpush1.bf16.msra.mxu0 0
    %234 = vmatprep.subr.bf16.mxu0 0
    %235 = vmatpush1.bf16.msra.mxu0 0
    %236 = vmatprep.subr.bf16.mxu0 0
    %237 = vmatpush1.bf16.msra.mxu0 0
    %238 = vmatprep.mubr.bf16.mxu0 0
    %239 = vmatmul.mubr.bf16.gmra.mrb[0].mxu0 %v134
    %v240 = vpop.f32.mrb[0].mxu0
    %v241 = vadd.f32 %v156, %v240
    %v242 = vpop.f32.mrb[0].mxu0
    %v243 = vpop.f32.mrb[0].mxu0
    %v244 = vadd.f32 %v156, %v243
    %v245 = vpop.f32.mrb[0].mxu0
    %246 = vdwg.mxu0
    %v247 = vmax.f32 %v241, 0.0
    %v248 = vmax.f32 %v244, 0.0
    %v249 = vld [vmem:[#allocation5] sm:$0xff]
    %v250 = vld [vmem:[#allocation5 + $0x8] sm:$0xff]
    %v251 = vld [vmem:[#allocation5 + $0x10] sm:$0xff]
    %v252 = vld [vmem:[#allocation5 + $0x18] sm:$0xff]
    %v253 = vld [vmem:[#allocation5 + $0x20] sm:$0xff]
    %v254 = vld [vmem:[#allocation5 + $0x28] sm:$0xff]
    %v255 = vld [vmem:[#allocation5 + $0x30] sm:$0xff]
    %v256 = vld [vmem:[#allocation5 + $0x38] sm:$0xff]
    %v257 = vld [vmem:[#allocation5 + $0x40] sm:$0xff]
    %v258 = vld [vmem:[#allocation5 + $0x48] sm:$0xff]
    %v259 = vld [vmem:[#allocation5 + $0x50] sm:$0xff]
    %v260 = vld [vmem:[#allocation5 + $0x58] sm:$0xff]
    %v261 = vld [vmem:[#allocation5 + $0x60] sm:$0xff]
    %v262 = vld [vmem:[#allocation5 + $0x68] sm:$0xff]
    %v263 = vld [vmem:[#allocation5 + $0x70] sm:$0xff]
    %v264 = vld [vmem:[#allocation5 + $0x78] sm:$0xff]
    %v265 = vld [vmem:[%s6] sm:$0x1]
    %v267 = vlaneseq
    %v268 = vshrl.u32 %v267, 7
    %v269 = vsub.s32 0, %v268
    %v270 = vrot.slane %v265, %v269
    %272 = vmatprep.subr.mxu0 0.0
    %273 = vmatpush1.msra.mxu0 %v249
    %274 = vmatprep.subr.mxu0 0.0
    %275 = vmatpush1.msra.mxu0 %v250
    %276 = vmatprep.subr.mxu0 0.0
    %277 = vmatpush1.msra.mxu0 %v251
    %278 = vmatprep.subr.mxu0 0.0
    %279 = vmatpush1.msra.mxu0 %v252
    %280 = vmatprep.subr.mxu0 0.0
    %281 = vmatpush1.msra.mxu0 %v253
    %282 = vmatprep.subr.mxu0 0.0
    %283 = vmatpush1.msra.mxu0 %v254
    %284 = vmatprep.subr.mxu0 0.0
    %285 = vmatpush1.msra.mxu0 %v255
    %286 = vmatprep.subr.mxu0 0.0
    %287 = vmatpush1.msra.mxu0 %v256
    %288 = vmatprep.subr.mxu0 0.0
    %289 = vmatpush1.msra.mxu0 %v257
    %290 = vmatprep.subr.mxu0 0.0
    %291 = vmatpush1.msra.mxu0 %v258
    %292 = vmatprep.subr.mxu0 0.0
    %293 = vmatpush1.msra.mxu0 %v259
    %294 = vmatprep.subr.mxu0 0.0
    %295 = vmatpush1.msra.mxu0 %v260
    %296 = vmatprep.subr.mxu0 0.0
    %297 = vmatpush1.msra.mxu0 %v261
    %298 = vmatprep.subr.mxu0 0.0
    %299 = vmatpush1.msra.mxu0 %v262
    %300 = vmatprep.subr.mxu0 0.0
    %301 = vmatpush1.msra.mxu0 %v263
    %302 = vmatprep.subr.mxu0 0.0
    %303 = vmatpush1.msra.mxu0 %v264
    %304 = vmatprep.subr.mxu0 0.0
    %305 = vmatpush1.msra.mxu0 0.0
    %306 = vmatprep.subr.mxu0 0.0
    %307 = vmatpush1.msra.mxu0 0.0
    %308 = vmatprep.subr.mxu0 0.0
    %309 = vmatpush1.msra.mxu0 0.0
    %310 = vmatprep.subr.mxu0 0.0
    %311 = vmatpush1.msra.mxu0 0.0
    %312 = vmatprep.subr.mxu0 0.0
    %313 = vmatpush1.msra.mxu0 0.0
    %314 = vmatprep.subr.mxu0 0.0
    %315 = vmatpush1.msra.mxu0 0.0
    %316 = vmatprep.subr.mxu0 0.0
    %317 = vmatpush1.msra.mxu0 0.0
    %318 = vmatprep.subr.mxu0 0.0
    %319 = vmatpush1.msra.mxu0 0.0
    %320 = vmatprep.subr.mxu0 0.0
    %321 = vmatpush1.msra.mxu0 0.0
    %322 = vmatprep.subr.mxu0 0.0
    %323 = vmatpush1.msra.mxu0 0.0
    %324 = vmatprep.subr.mxu0 0.0
    %325 = vmatpush1.msra.mxu0 0.0
    %326 = vmatprep.subr.mxu0 0.0
    %327 = vmatpush1.msra.mxu0 0.0
    %328 = vmatprep.subr.mxu0 0.0
    %329 = vmatpush1.msra.mxu0 0.0
    %330 = vmatprep.subr.mxu0 0.0
    %331 = vmatpush1.msra.mxu0 0.0
    %332 = vmatprep.subr.mxu0 0.0
    %333 = vmatpush1.msra.mxu0 0.0
    %334 = vmatprep.subr.mxu0 0.0
    %335 = vmatpush1.msra.mxu0 0.0
    %336 = vmatprep.mubr.f32.mxu0 0.0
    %337 = vmatmul.mubr.f32.gmra.mrb[0].mxu0 %v247
    %v338 = vpop.f32.mrb[0].mxu0
    %v339 = vadd.f32 %v270, %v338
    %v340 = vpop.f32.mrb[0].mxu0
    %341 = vmatprep.mubr.f32.mxu0 0.0
    %342 = vmatmul.mubr.f32.gmra.mrb[0].mxu0 %v248
    %v343 = vpop.f32.mrb[0].mxu0
    %v344 = vadd.f32 %v270, %v343
    %v345 = vpop.f32.mrb[0].mxu0
    %346 = vdwg.mxu0
    %v347 = vpack.c.bf16 %v344, %v339
    %v349 = vunpack.c.l.b16 %v347
    %v350 = vunpack.c.h.b16 %v347
    %v351 = vpack.c.b16 %v349, %v349
    %v352 = vpack.c.b16 %v350, %v350
    %355 = vst [vmem:[#allocation7] sm:$0xf] %v351
    %356 = vst [vmem:[#allocation7 + $0x4] sm:$0xf] %v352
    // Predicated region
    $region38: #{tpu_custom_call.1} parent=1 // pred_check
      _
    $region39: #{tpu_custom_call.1} parent=1 // pred_check_branch
      %358 = sbr.rel (0) target = $region41
    $region40: #{tpu_custom_call.1} parent=1 // pred_region
      %s360 = ssub.s32 128, 128
      %361 = vsyncadd [#allocation4], %s360
      %s362 = sshll.u32 [#allocation7], 4
      %s363 = int_to_ptr.vmem [resolvable:$true] %s362
      %368 = dma.vmem_to_hbm [thread:$0]  %s363, 128, %s7, [#allocation4], 64, 64, 4
    $region41: #{tpu_custom_call.1} parent=1 // pred_fallthru
      _
    // Predicated region
    $region42: #{tpu_custom_call.1} parent=1 // pred_check
      _
    $region43: #{tpu_custom_call.1} parent=1 // pred_check_branch
      %370 = sbr.rel (0) target = $region45
    $region44: #{tpu_custom_call.1} parent=1 // pred_region
      %371 = dma.done [#allocation4], 128
    $region45: #{tpu_custom_call.1} parent=1 // pred_fallthru
      _
    %372 = vsyncpa [#allocation3], 1
    %373 = vsyncpa [#allocation6], 1
    %374 = vsyncpa [#allocation4], 1

// kernel: tpu_custom_call.1
$region0: #{tpu_custom_call.1}
  #allocation0 [shape = 'u32[]', space=smem, size = 0x4, offset = 0x4, fixed_abs, tag = 'smem constant byte address 0x4 - core index']
  #allocation1 [shape = 'u32[144,128]{1,0:T(1,128)}', space=vmem, size = 0x12000, scoped, tag = 'internal scratch']
  %s0 = inlined_call_operand.vmem [shape: f32[16,4], index: 0, kind: input, shape index: {}]
  %s1 = inlined_call_operand.vmem [shape: f32[4,128], index: 1, kind: input, shape index: {}]
  %s2 = inlined_call_operand.vmem [shape: f32[1,128], index: 2, kind: input, shape index: {}]
  %s3 = inlined_call_operand.hbm [shape: bf16[128,128], index: 3, kind: input, shape index: {}]
  %s4 = inlined_call_operand.vmem [shape: f32[1,128], index: 4, kind: input, shape index: {}]
  %s5 = inlined_call_operand.hbm [shape: f32[128,128], index: 5, kind: input, shape index: {}]
  %s6 = inlined_call_operand.vmem [shape: f32[1,128], index: 6, kind: input, shape index: {}]
  %s7 = inlined_call_operand.hbm [shape: bf16[16,128], index: 7, kind: output, shape index: {}]
  %s8 = sld [smem:[#allocation0]]
  $region46: #{tpu_custom_call.1} parent=0
    _
  %s10 = ssub.s32 1, %s8
  %s11 = scalar_select 0, %s10, %s8
  $region1: #{tpu_custom_call.1} parent=0
    #allocation2 [shape = 'u8[32768]{0}', space=vmem, size = 0x8000, scoped, tag = 'input window, operand 3, single buffered']
    #allocation3 [shape = 's32[1]{0}', space=sflag, size = 0x4, scoped, tag = 'scoped memory for tpu_custom_call.1']
    #allocation4 [shape = 's32[1]{0}', space=sflag, size = 0x4, scoped, tag = 'scoped memory for tpu_custom_call.1']
    #allocation5 [shape = 'u8[65536]{0}', space=vmem, size = 0x10000, scoped, tag = 'input window, operand 5, single buffered']
    #allocation6 [shape = 's32[1]{0}', space=sflag, size = 0x4, scoped, tag = 'scoped memory for tpu_custom_call.1']
    #allocation7 [shape = 'u8[4096]{0}', space=vmem, size = 0x1000, scoped, tag = 'output window, operand 0, single buffered']
    %12 = vsyncpa [#allocation3], 0
    %13 = vsyncpa [#allocation6], 0
    %14 = vsyncpa [#allocation4], 0
    // Predicated region
    $region2: #{tpu_custom_call.1} parent=1 // pred_check
      _
    $region3: #{tpu_custom_call.1} parent=1 // pred_check_branch
      %16 = sbr.rel (0) target = $region5
    $region4: #{tpu_custom_call.1} parent=1 // pred_region
      _
    $region5: #{tpu_custom_call.1} parent=1 // pred_fallthru
      _
    // Predicated region
    $region6: #{tpu_custom_call.1} parent=1 // pred_check
      _
    $region7: #{tpu_custom_call.1} parent=1 // pred_check_branch
      %18 = sbr.rel (0) target = $region9
    $region8: #{tpu_custom_call.1} parent=1 // pred_region
      _
    $region9: #{tpu_custom_call.1} parent=1 // pred_fallthru
      _
    // Predicated region
    $region10: #{tpu_custom_call.1} parent=1 // pred_check
      _
    $region11: #{tpu_custom_call.1} parent=1 // pred_check_branch
      %20 = sbr.rel (0) target = $region13
    $region12: #{tpu_custom_call.1} parent=1 // pred_region
      _
    $region13: #{tpu_custom_call.1} parent=1 // pred_fallthru
      _
    // Predicated region
    $region14: #{tpu_custom_call.1} parent=1 // pred_check
      _
    $region15: #{tpu_custom_call.1} parent=1 // pred_check_branch
      %22 = sbr.rel (0) target = $region17
    $region16: #{tpu_custom_call.1} parent=1 // pred_region
      %s24 = ssub.s32 1024, 1024
      %25 = vsyncadd [#allocation3], %s24
      %s26 = sshll.u32 [#allocation2], 4
      %s27 = int_to_ptr.vmem [resolvable:$true] %s26
      %32 = dma.hbm_to_vmem [thread:$0]  %s3, 1024, %s27, [#allocation3], 64, 64, 4
    $region17: #{tpu_custom_call.1} parent=1 // pred_fallthru
      _
    // Predicated region
    $region18: #{tpu_custom_call.1} parent=1 // pred_check
      _
    $region19: #{tpu_custom_call.1} parent=1 // pred_check_branch
      %34 = sbr.rel (0) target = $region21
    $region20: #{tpu_custom_call.1} parent=1 // pred_region
      _
    $region21: #{tpu_custom_call.1} parent=1 // pred_fallthru
      _
    // Predicated region
    $region22: #{tpu_custom_call.1} parent=1 // pred_check
      _
    $region23: #{tpu_custom_call.1} parent=1 // pred_check_branch
      %36 = sbr.rel (0) target = $region25
    $region24: #{tpu_custom_call.1} parent=1 // pred_region
      %s38 = ssub.s32 2048, 2048
      %39 = vsyncadd [#allocation6], %s38
      %s40 = sshll.u32 [#allocation5], 4
      %s41 = int_to_ptr.vmem [resolvable:$true] %s40
      %46 = dma.hbm_to_vmem [thread:$0]  %s5, 2048, %s41, [#allocation6], 128, 128, 8
    $region25: #{tpu_custom_call.1} parent=1 // pred_fallthru
      _
    // Predicated region
    $region26: #{tpu_custom_call.1} parent=1 // pred_check
      _
    $region27: #{tpu_custom_call.1} parent=1 // pred_check_branch
      %48 = sbr.rel (0) target = $region29
    $region28: #{tpu_custom_call.1} parent=1 // pred_region
      _
    $region29: #{tpu_custom_call.1} parent=1 // pred_fallthru
      _
    // Predicated region
    $region30: #{tpu_custom_call.1} parent=1 // pred_check
      _
    $region31: #{tpu_custom_call.1} parent=1 // pred_check_branch
      %50 = sbr.rel (0) target = $region33
    $region32: #{tpu_custom_call.1} parent=1 // pred_region
      %51 = dma.done [#allocation3], 1024
    $region33: #{tpu_custom_call.1} parent=1 // pred_fallthru
      _
    // Predicated region
    $region34: #{tpu_custom_call.1} parent=1 // pred_check
      _
    $region35: #{tpu_custom_call.1} parent=1 // pred_check_branch
      %53 = sbr.rel (0) target = $region37
    $region36: #{tpu_custom_call.1} parent=1 // pred_region
      %54 = dma.done [#allocation6], 2048
    $region37: #{tpu_custom_call.1} parent=1 // pred_fallthru
      _
    %v56 = vld [vmem:[%s0] sm:$0xff]
    %v57 = vld [vmem:[%s0 + $0x8] sm:$0xff]
    %v58 = vld [vmem:[%s1] sm:$0xf]
    %v59 = vld [vmem:[%s2] sm:$0x1]
    %v61 = vlaneseq
    %v62 = vshrl.u32 %v61, 7
    %v63 = vsub.s32 0, %v62
    %v64 = vrot.slane %v59, %v63
    %67 = vset.pattern.permute.xlu0 0
    %68 = vperm.xlu0 %67, %v56
    %v69 = vpop.permute.xlu0 %68
    %72 = vset.pattern.permute.xlu0 0
    %73 = vperm.xlu0 %72, %v57
    %v74 = vpop.permute.xlu0 %73
    %v76 = vlaneseq
    %v77 = vshrl.u32 %v76, 7
    %v78 = vsub.s32 0, %v77
    %v79 = vrot.slane %v58, %v78
    %v80 = vmul.f32 %v69, %v79
    %v81 = vmul.f32 %v74, %v79
    %v82 = vadd.f32 %v64, %v80
    %v83 = vadd.f32 %v64, %v81
    %84 = vset.pattern.permute.xlu0 1
    %85 = vperm.xlu0 %84, %v56
    %v86 = vpop.permute.xlu0 %85
    %88 = vset.pattern.permute.xlu0 1
    %89 = vperm.xlu0 %88, %v57
    %v90 = vpop.permute.xlu0 %89
    %v92 = vlaneseq
    %v93 = vshrl.u32 %v92, 7
    %v94 = vsub.s32 1, %v93
    %v95 = vrot.slane %v58, %v94
    %v96 = vmul.f32 %v86, %v95
    %v97 = vmul.f32 %v90, %v95
    %v98 = vadd.f32 %v82, %v96
    %v99 = vadd.f32 %v83, %v97
    %100 = vset.pattern.permute.xlu0 2
    %101 = vperm.xlu0 %100, %v56
    %v102 = vpop.permute.xlu0 %101
    %104 = vset.pattern.permute.xlu0 2
    %105 = vperm.xlu0 %104, %v57
    %v106 = vpop.permute.xlu0 %105
    %v108 = vlaneseq
    %v109 = vshrl.u32 %v108, 7
    %v110 = vsub.s32 2, %v109
    %v111 = vrot.slane %v58, %v110
    %v112 = vmul.f32 %v102, %v111
    %v113 = vmul.f32 %v106, %v111
    %v114 = vadd.f32 %v98, %v112
    %v115 = vadd.f32 %v99, %v113
    %116 = vset.pattern.permute.xlu0 3
    %117 = vperm.xlu0 %116, %v56
    %v118 = vpop.permute.xlu0 %117
    %120 = vset.pattern.permute.xlu0 3
    %121 = vperm.xlu0 %120, %v57
    %v122 = vpop.permute.xlu0 %121
    %v124 = vlaneseq
    %v125 = vshrl.u32 %v124, 7
    %v126 = vsub.s32 3, %v125
    %v127 = vrot.slane %v58, %v126
    %v128 = vmul.f32 %v118, %v127
    %v129 = vmul.f32 %v122, %v127
    %v130 = vadd.f32 %v114, %v128
    %v131 = vadd.f32 %v115, %v129
    %v132 = vmax.f32 %v130, 0.0
    %v133 = vmax.f32 %v131, 0.0
    %v134 = vpack.c.bf16 %v133, %v132
    %v135 = vld [vmem:[#allocation2] sm:$0xf]
    %v136 = vld [vmem:[#allocation2 + $0x4] sm:$0xf]
    %v137 = vld [vmem:[#allocation2 + $0x8] sm:$0xf]
    %v138 = vld [vmem:[#allocation2 + $0xc] sm:$0xf]
    %v139 = vld [vmem:[#allocation2 + $0x10] sm:$0xf]
    %v140 = vld [vmem:[#allocation2 + $0x14] sm:$0xf]
    %v141 = vld [vmem:[#allocation2 + $0x18] sm:$0xf]
    %v142 = vld [vmem:[#allocation2 + $0x1c] sm:$0xf]
    %v143 = vld [vmem:[#allocation2 + $0x20] sm:$0xf]
    %v144 = vld [vmem:[#allocation2 + $0x24] sm:$0xf]
    %v145 = vld [vmem:[#allocation2 + $0x28] sm:$0xf]
    %v146 = vld [vmem:[#allocation2 + $0x2c] sm:$0xf]
    %v147 = vld [vmem:[#allocation2 + $0x30] sm:$0xf]
    %v148 = vld [vmem:[#allocation2 + $0x34] sm:$0xf]
    %v149 = vld [vmem:[#allocation2 + $0x38] sm:$0xf]
    %v150 = vld [vmem:[#allocation2 + $0x3c] sm:$0xf]
    %v151 = vld [vmem:[%s4] sm:$0x1]
    %v153 = vlaneseq
    %v154 = vshrl.u32 %v153, 7
    %v155 = vsub.s32 0, %v154
    %v156 = vrot.slane %v151, %v155
    %v174 = vunpack.c.l.b16 %v135
    %v175 = vunpack.c.l.b16 %v136
    %v176 = vunpack.c.l.b16 %v137
    %v177 = vunpack.c.l.b16 %v138
    %v178 = vunpack.c.l.b16 %v139
    %v179 = vunpack.c.l.b16 %v140
    %v180 = vunpack.c.l.b16 %v141
    %v181 = vunpack.c.l.b16 %v142
    %v182 = vunpack.c.l.b16 %v143
    %v183 = vunpack.c.l.b16 %v144
    %v184 = vunpack.c.l.b16 %v145
    %v185 = vunpack.c.l.b16 %v146
    %v186 = vunpack.c.l.b16 %v147
    %v187 = vunpack.c.l.b16 %v148
    %v188 = vunpack.c.l.b16 %v149
    %v189 = vunpack.c.l.b16 %v150
    %v190 = vpack.c.b16 %v175, %v174
    %v191 = vpack.c.b16 %v177, %v176
    %v192 = vpack.c.b16 %v179, %v178
    %v193 = vpack.c.b16 %v181, %v180
    %v194 = vpack.c.b16 %v183, %v182
    %v195 = vpack.c.b16 %v185, %v184
    %v196 = vpack.c.b16 %v187, %v186
    %v197 = vpack.c.b16 %v189, %v188
    %206 = vmatprep.subr.bf16.mxu0 0
    %207 = vmatpush1.bf16.msra.mxu0 %v190
    %208 = vmatprep.subr.bf16.mxu0 0
    %209 = vmatpush1.bf16.msra.mxu0 %v191
    %210 = vmatprep.subr.bf16.mxu0 0
    %211 = vmatpush1.bf16.msra.mxu0 %v192
    %212 = vmatprep.subr.bf16.mxu0 0
    %213 = vmatpush1.bf16.msra.mxu0 %v193
    %214 = vmatprep.subr.bf16.mxu0 0
    %215 = vmatpush1.bf16.msra.mxu0 %v194
    %216 = vmatprep.subr.bf16.mxu0 0
    %217 = vmatpush1.bf16.msra.mxu0 %v195
    %218 = vmatprep.subr.bf16.mxu0 0
    %219 = vmatpush1.bf16.msra.mxu0 %v196
    %220 = vmatprep.subr.bf16.mxu0 0
    %221 = vmatpush1.bf16.msra.mxu0 %v197
    %222 = vmatprep.subr.bf16.mxu0 0
    %223 = vmatpush1.bf16.msra.mxu0 0
    %224 = vmatprep.subr.bf16.mxu0 0
    %225 = vmatpush1.bf16.msra.mxu0 0
    %226 = vmatprep.subr.bf16.mxu0 0
    %227 = vmatpush1.bf16.msra.mxu0 0
    %228 = vmatprep.subr.bf16.mxu0 0
    %229 = vmatpush1.bf16.msra.mxu0 0
    %230 = vmatprep.subr.bf16.mxu0 0
    %231 = vmatpush1.bf16.msra.mxu0 0
    %232 = vmatprep.subr.bf16.mxu0 0
    %233 = vmatpush1.bf16.msra.mxu0 0
    %234 = vmatprep.subr.bf16.mxu0 0
    %235 = vmatpush1.bf16.msra.mxu0 0
    %236 = vmatprep.subr.bf16.mxu0 0
    %237 = vmatpush1.bf16.msra.mxu0 0
    %238 = vmatprep.mubr.bf16.mxu0 0
    %239 = vmatmul.mubr.bf16.gmra.mrb[0].mxu0 %v134
    %v240 = vpop.f32.mrb[0].mxu0
    %v241 = vadd.f32 %v156, %v240
    %v242 = vpop.f32.mrb[0].mxu0
    %v243 = vpop.f32.mrb[0].mxu0
    %v244 = vadd.f32 %v156, %v243
    %v245 = vpop.f32.mrb[0].mxu0
    %246 = vdwg.mxu0
    %v247 = vmax.f32 %v241, 0.0
    %v248 = vmax.f32 %v244, 0.0
    %v249 = vld [vmem:[#allocation5] sm:$0xff]
    %v250 = vld [vmem:[#allocation5 + $0x8] sm:$0xff]
    %v251 = vld [vmem:[#allocation5 + $0x10] sm:$0xff]
    %v252 = vld [vmem:[#allocation5 + $0x18] sm:$0xff]
    %v253 = vld [vmem:[#allocation5 + $0x20] sm:$0xff]
    %v254 = vld [vmem:[#allocation5 + $0x28] sm:$0xff]
    %v255 = vld [vmem:[#allocation5 + $0x30] sm:$0xff]
    %v256 = vld [vmem:[#allocation5 + $0x38] sm:$0xff]
    %v257 = vld [vmem:[#allocation5 + $0x40] sm:$0xff]
    %v258 = vld [vmem:[#allocation5 + $0x48] sm:$0xff]
    %v259 = vld [vmem:[#allocation5 + $0x50] sm:$0xff]
    %v260 = vld [vmem:[#allocation5 + $0x58] sm:$0xff]
    %v261 = vld [vmem:[#allocation5 + $0x60] sm:$0xff]
    %v262 = vld [vmem:[#allocation5 + $0x68] sm:$0xff]
    %v263 = vld [vmem:[#allocation5 + $0x70] sm:$0xff]
    %v264 = vld [vmem:[#allocation5 + $0x78] sm:$0xff]
    %v265 = vld [vmem:[%s6] sm:$0x1]
    %v267 = vlaneseq
    %v268 = vshrl.u32 %v267, 7
    %v269 = vsub.s32 0, %v268
    %v270 = vrot.slane %v265, %v269
    %272 = vmatprep.subr.mxu0 0.0
    %273 = vmatpush1.msra.mxu0 %v249
    %274 = vmatprep.subr.mxu0 0.0
    %275 = vmatpush1.msra.mxu0 %v250
    %276 = vmatprep.subr.mxu0 0.0
    %277 = vmatpush1.msra.mxu0 %v251
    %278 = vmatprep.subr.mxu0 0.0
    %279 = vmatpush1.msra.mxu0 %v252
    %280 = vmatprep.subr.mxu0 0.0
    %281 = vmatpush1.msra.mxu0 %v253
    %282 = vmatprep.subr.mxu0 0.0
    %283 = vmatpush1.msra.mxu0 %v254
    %284 = vmatprep.subr.mxu0 0.0
    %285 = vmatpush1.msra.mxu0 %v255
    %286 = vmatprep.subr.mxu0 0.0
    %287 = vmatpush1.msra.mxu0 %v256
    %288 = vmatprep.subr.mxu0 0.0
    %289 = vmatpush1.msra.mxu0 %v257
    %290 = vmatprep.subr.mxu0 0.0
    %291 = vmatpush1.msra.mxu0 %v258
    %292 = vmatprep.subr.mxu0 0.0
    %293 = vmatpush1.msra.mxu0 %v259
    %294 = vmatprep.subr.mxu0 0.0
    %295 = vmatpush1.msra.mxu0 %v260
    %296 = vmatprep.subr.mxu0 0.0
    %297 = vmatpush1.msra.mxu0 %v261
    %298 = vmatprep.subr.mxu0 0.0
    %299 = vmatpush1.msra.mxu0 %v262
    %300 = vmatprep.subr.mxu0 0.0
    %301 = vmatpush1.msra.mxu0 %v263
    %302 = vmatprep.subr.mxu0 0.0
    %303 = vmatpush1.msra.mxu0 %v264
    %304 = vmatprep.subr.mxu0 0.0
    %305 = vmatpush1.msra.mxu0 0.0
    %306 = vmatprep.subr.mxu0 0.0
    %307 = vmatpush1.msra.mxu0 0.0
    %308 = vmatprep.subr.mxu0 0.0
    %309 = vmatpush1.msra.mxu0 0.0
    %310 = vmatprep.subr.mxu0 0.0
    %311 = vmatpush1.msra.mxu0 0.0
    %312 = vmatprep.subr.mxu0 0.0
    %313 = vmatpush1.msra.mxu0 0.0
    %314 = vmatprep.subr.mxu0 0.0
    %315 = vmatpush1.msra.mxu0 0.0
    %316 = vmatprep.subr.mxu0 0.0
    %317 = vmatpush1.msra.mxu0 0.0
    %318 = vmatprep.subr.mxu0 0.0
    %319 = vmatpush1.msra.mxu0 0.0
    %320 = vmatprep.subr.mxu0 0.0
    %321 = vmatpush1.msra.mxu0 0.0
    %322 = vmatprep.subr.mxu0 0.0
    %323 = vmatpush1.msra.mxu0 0.0
    %324 = vmatprep.subr.mxu0 0.0
    %325 = vmatpush1.msra.mxu0 0.0
    %326 = vmatprep.subr.mxu0 0.0
    %327 = vmatpush1.msra.mxu0 0.0
    %328 = vmatprep.subr.mxu0 0.0
    %329 = vmatpush1.msra.mxu0 0.0
    %330 = vmatprep.subr.mxu0 0.0
    %331 = vmatpush1.msra.mxu0 0.0
    %332 = vmatprep.subr.mxu0 0.0
    %333 = vmatpush1.msra.mxu0 0.0
    %334 = vmatprep.subr.mxu0 0.0
    %335 = vmatpush1.msra.mxu0 0.0
    %336 = vmatprep.mubr.f32.mxu0 0.0
    %337 = vmatmul.mubr.f32.gmra.mrb[0].mxu0 %v247
    %v338 = vpop.f32.mrb[0].mxu0
    %v339 = vadd.f32 %v270, %v338
    %v340 = vpop.f32.mrb[0].mxu0
    %341 = vmatprep.mubr.f32.mxu0 0.0
    %342 = vmatmul.mubr.f32.gmra.mrb[0].mxu0 %v248
    %v343 = vpop.f32.mrb[0].mxu0
    %v344 = vadd.f32 %v270, %v343
    %v345 = vpop.f32.mrb[0].mxu0
    %346 = vdwg.mxu0
    %v347 = vpack.c.bf16 %v344, %v339
    %v349 = vunpack.c.l.b16 %v347
    %v350 = vunpack.c.h.b16 %v347
    %v351 = vpack.c.b16 %v349, %v349
    %v352 = vpack.c.b16 %v350, %v350
    %355 = vst [vmem:[#allocation7] sm:$0xf] %v351
    %356 = vst [vmem:[#allocation7 + $0x4] sm:$0xf] %v352
    // Predicated region
    $region38: #{tpu_custom_call.1} parent=1 // pred_check
      _
    $region39: #{tpu_custom_call.1} parent=1 // pred_check_branch
      %358 = sbr.rel (0) target = $region41
    $region40: #{tpu_custom_call.1} parent=1 // pred_region
      %s360 = ssub.s32 128, 128
      %361 = vsyncadd [#allocation4], %s360
      %s362 = sshll.u32 [#allocation7], 4
      %s363 = int_to_ptr.vmem [resolvable:$true] %s362
      %368 = dma.vmem_to_hbm [thread:$0]  %s363, 128, %s7, [#allocation4], 64, 64, 4
    $region41: #{tpu_custom_call.1} parent=1 // pred_fallthru
      _
    // Predicated region
    $region42: #{tpu_custom_call.1} parent=1 // pred_check
      _
    $region43: #{tpu_custom_call.1} parent=1 // pred_check_branch
      %370 = sbr.rel (0) target = $region45
    $region44: #{tpu_custom_call.1} parent=1 // pred_region
      %371 = dma.done [#allocation4], 128
    $region45: #{tpu_custom_call.1} parent=1 // pred_fallthru
      _
    %372 = vsyncpa [#allocation3], 1
    %373 = vsyncpa [#allocation6], 1
    %374 = vsyncpa [#allocation4], 1

</llo_original>
